<compile_context>
chip_gen: v5e
topology: v5e:2x2
jax: 0.10.0
libtpu: 0.0.40
codegen_flags: <defaults>
</compile_context>

<pallas_src>
import jax
import jax.numpy as jnp
from jax.experimental import pallas as pl
from jax.experimental.pallas import tpu as pltpu


def ffn_kernel(x_ref, w1_ref, b1_ref, w2_ref, b2_ref, o_ref):
    # x_ref:  (TM, d_model)
    # w1_ref: (d_model, d_ff), b1_ref: (1, d_ff)
    # w2_ref: (d_ff, d_model), b2_ref: (1, d_model)
    # o_ref:  (TM, d_model)
    h = jnp.dot(x_ref[...], w1_ref[...], preferred_element_type=jnp.float32)
    h = jnp.maximum(h + b1_ref[...], 0.0)          # bias + ReLU in f32
    out = jnp.dot(h.astype(w2_ref.dtype), w2_ref[...],
                  preferred_element_type=jnp.float32)
    o_ref[...] = (out + b2_ref[...]).astype(o_ref.dtype)


def positionwise_ffn(x, w1, b1, w2, b2, *, block_m=256):
    """x: (batch, seq, d_model)  ->  (batch, seq, d_model)  (eval-mode FFN)."""
    batch, seq, d_model = x.shape
    d_ff = w1.shape[1]
    M = batch * seq
    x2d = x.reshape(M, d_model)

    # --- choose an MXU/sublane-friendly row tile and pad M up to a multiple ---
    tm = min(block_m, M)
    tm = ((tm + 7) // 8) * 8                  # multiple of 8 sublanes
    m_pad = pl.cdiv(M, tm) * tm
    if m_pad != M:
        x2d = jnp.pad(x2d, ((0, m_pad - M), (0, 0)))
    grid_m = m_pad // tm

    itemsize = jnp.dtype(x.dtype).itemsize
    w_itemsize = jnp.dtype(w1.dtype).itemsize

    # Advisory cost estimate for the XLA scheduler.
    flops = 4 * m_pad * d_model * d_ff        # two matmuls, 2*M*K*N each
    bytes_accessed = (
        m_pad * d_model * itemsize            # x in
        + m_pad * d_model * itemsize          # out
        + (d_model * d_ff + d_ff + d_ff * d_model + d_model) * w_itemsize
    )
    cost = pl.CostEstimate(flops=flops, transcendentals=0,
                           bytes_accessed=bytes_accessed)

    # VMEM budget: resident weights/biases + double-buffered x/out tiles +
    # the (TM, d_ff) f32 hidden activation.  Leave 2x headroom, stay within the
    # v7x 64 MiB physical ceiling.
    # TODO(synk): for very large d_model/d_ff (weights > VMEM) add a d_ff
    # reduction grid axis with a (TM, d_model) f32 accumulator instead of
    # keeping w1/w2 fully resident.
    vmem_est = (
        (d_model * d_ff + d_ff + d_ff * d_model + d_model) * w_itemsize
        + 2 * tm * d_model * itemsize         # double-buffered x tiles
        + 2 * tm * d_model * itemsize         # double-buffered out tiles
        + tm * d_ff * 4                       # f32 hidden intermediate
    )
    vmem_limit = int(min(max(2 * vmem_est, 32 * 1024 * 1024), 64 * 1024 * 1024))

    out2d = pl.pallas_call(
        ffn_kernel,
        out_shape=jax.ShapeDtypeStruct((m_pad, d_model), x.dtype),
        grid_spec=pltpu.PrefetchScalarGridSpec(
            num_scalar_prefetch=0,
            grid=(grid_m,),
            in_specs=[
                pl.BlockSpec((tm, d_model), lambda i: (i, 0)),       # x tile
                pl.BlockSpec((d_model, d_ff), lambda i: (0, 0)),     # w1 resident
                pl.BlockSpec((1, d_ff), lambda i: (0, 0)),           # b1 resident
                pl.BlockSpec((d_ff, d_model), lambda i: (0, 0)),     # w2 resident
                pl.BlockSpec((1, d_model), lambda i: (0, 0)),        # b2 resident
            ],
            out_specs=pl.BlockSpec((tm, d_model), lambda i: (i, 0)),
        ),
        compiler_params=pltpu.CompilerParams(
            dimension_semantics=("parallel",),
            vmem_limit_bytes=vmem_limit,
        ),
        cost_estimate=cost,
    )(x2d, w1, b1, w2, b2)

    return out2d[:M].reshape(batch, seq, d_model)


def init_params(key, d_model, d_ff, dtype=jnp.float32):
    """Deterministic init mimicking nn.Linear (uniform +-1/sqrt(fan_in))."""
    k1, k2, k3, k4 = jax.random.split(key, 4)
    bound1 = 1.0 / (d_model ** 0.5)
    bound2 = 1.0 / (d_ff ** 0.5)
    # stored as (in, out) so the kernel computes x @ W + b
    w1 = jax.random.uniform(k1, (d_model, d_ff), dtype, -bound1, bound1)
    b1 = jax.random.uniform(k2, (1, d_ff), dtype, -bound1, bound1)
    w2 = jax.random.uniform(k3, (d_ff, d_model), dtype, -bound2, bound2)
    b2 = jax.random.uniform(k4, (1, d_model), dtype, -bound2, bound2)
    return w1, b1, w2, b2


if __name__ == "__main__":
    batch, seq, d_model, d_ff = 2, 8, 32, 64

    key = jax.random.PRNGKey(0)
    kx, kp = jax.random.split(key)
    x = jax.random.normal(kx, (batch, seq, d_model), dtype=jnp.float32)
    w1, b1, w2, b2 = init_params(kp, d_model, d_ff)

    out = positionwise_ffn(x, w1, b1, w2, b2)
    out = jax.block_until_ready(out)

    # reference check in plain JAX (eval-mode forward)
    ref = jnp.maximum(x @ w1 + b1[0], 0.0) @ w2 + b2[0]
    assert out.shape == (batch, seq, d_model)
    assert jnp.allclose(out, ref, atol=1e-5, rtol=1e-5)

    print("KERNEL_OK")
</pallas_src>

<mosaic_0001>
module attributes {stable_mosaic.version = 11 : i64} {
  func.func @ffn_kernel(%arg0: i32, %arg1: memref<16x32xf32, #tpu.memory_space<vmem>>, %arg2: memref<32x64xf32, #tpu.memory_space<vmem>>, %arg3: memref<1x64xf32, #tpu.memory_space<vmem>>, %arg4: memref<64x32xf32, #tpu.memory_space<vmem>>, %arg5: memref<1x32xf32, #tpu.memory_space<vmem>>, %arg6: memref<16x32xf32, #tpu.memory_space<vmem>>) attributes {dimension_semantics = [#tpu.dimension_semantics<parallel>], iteration_bounds = array<i64: 1>, scalar_prefetch = 0 : i64, scratch_operands = 0 : i64, tpu.core_type = #tpu.core_type<tc>, window_params = [{transform_indices = @transform_0, window_bounds = array<i64: 16, 32>}, {pipeline_mode = #tpu.pipeline_mode<synchronous>, transform_indices = @transform_1, window_bounds = array<i64: 32, 64>}, {pipeline_mode = #tpu.pipeline_mode<synchronous>, transform_indices = @transform_2, window_bounds = array<i64: 1, 64>}, {pipeline_mode = #tpu.pipeline_mode<synchronous>, transform_indices = @transform_3, window_bounds = array<i64: 64, 32>}, {pipeline_mode = #tpu.pipeline_mode<synchronous>, transform_indices = @transform_4, window_bounds = array<i64: 1, 32>}, {transform_indices = @transform_5, window_bounds = array<i64: 16, 32>}]} {
    %c0 = arith.constant 0 : index
    %c0_0 = arith.constant 0 : index
    %0 = vector.load %arg1[%c0, %c0_0] : memref<16x32xf32, #tpu.memory_space<vmem>>, vector<16x32xf32>
    %c0_1 = arith.constant 0 : index
    %c0_2 = arith.constant 0 : index
    %1 = vector.load %arg2[%c0_1, %c0_2] : memref<32x64xf32, #tpu.memory_space<vmem>>, vector<32x64xf32>
    %cst = arith.constant dense<0.000000e+00> : vector<16x64xf32>
    %2 = tpu.matmul %0, %1, %cst {dimension_numbers = #tpu.dot_dimension_numbers<[1], [0], [0], [1], [0, 0, 1, 1], [], []>} : vector<16x32xf32>, vector<32x64xf32>, vector<16x64xf32> -> vector<16x64xf32>
    %c0_3 = arith.constant 0 : index
    %c0_4 = arith.constant 0 : index
    %3 = vector.load %arg3[%c0_3, %c0_4] : memref<1x64xf32, #tpu.memory_space<vmem>>, vector<1x64xf32>
    %4 = vector.broadcast %3 : vector<1x64xf32> to vector<16x64xf32>
    %5 = arith.addf %2, %4 : vector<16x64xf32>
    %cst_5 = arith.constant 0.000000e+00 : f32
    %6 = vector.broadcast %cst_5 : f32 to vector<16x64xf32>
    %7 = arith.maximumf %5, %6 : vector<16x64xf32>
    %c0_6 = arith.constant 0 : index
    %c0_7 = arith.constant 0 : index
    %8 = vector.load %arg4[%c0_6, %c0_7] : memref<64x32xf32, #tpu.memory_space<vmem>>, vector<64x32xf32>
    %cst_8 = arith.constant dense<0.000000e+00> : vector<16x32xf32>
    %9 = tpu.matmul %7, %8, %cst_8 {dimension_numbers = #tpu.dot_dimension_numbers<[1], [0], [0], [1], [0, 0, 1, 1], [], []>} : vector<16x64xf32>, vector<64x32xf32>, vector<16x32xf32> -> vector<16x32xf32>
    %c0_9 = arith.constant 0 : index
    %c0_10 = arith.constant 0 : index
    %10 = vector.load %arg5[%c0_9, %c0_10] : memref<1x32xf32, #tpu.memory_space<vmem>>, vector<1x32xf32>
    %11 = vector.broadcast %10 : vector<1x32xf32> to vector<16x32xf32>
    %12 = arith.addf %9, %11 : vector<16x32xf32>
    %c0_11 = arith.constant 0 : index
    %c0_12 = arith.constant 0 : index
    %13 = vector.load %arg6[%c0_11, %c0_12] : memref<16x32xf32, #tpu.memory_space<vmem>>, vector<16x32xf32>
    tpu.vector_store %arg6[%c0_11, %c0_12], %12 {strides = array<i32>} : memref<16x32xf32, #tpu.memory_space<vmem>>, vector<16x32xf32>,
    return
  }
  func.func @transform_0(%arg0: i32) -> (i32, i32) {
    %c0_i32 = arith.constant 0 : i32
    %c0_i32_0 = arith.constant 0 : i32
    return %arg0, %c0_i32 : i32, i32
  }
  func.func @transform_1(%arg0: i32) -> (i32, i32) {
    %c0_i32 = arith.constant 0 : i32
    %c0_i32_0 = arith.constant 0 : i32
    %c0_i32_1 = arith.constant 0 : i32
    return %c0_i32, %c0_i32_0 : i32, i32
  }
  func.func @transform_2(%arg0: i32) -> (i32, i32) {
    %c0_i32 = arith.constant 0 : i32
    %c0_i32_0 = arith.constant 0 : i32
    %c0_i32_1 = arith.constant 0 : i32
    return %c0_i32, %c0_i32_0 : i32, i32
  }
  func.func @transform_3(%arg0: i32) -> (i32, i32) {
    %c0_i32 = arith.constant 0 : i32
    %c0_i32_0 = arith.constant 0 : i32
    %c0_i32_1 = arith.constant 0 : i32
    return %c0_i32, %c0_i32_0 : i32, i32
  }
  func.func @transform_4(%arg0: i32) -> (i32, i32) {
    %c0_i32 = arith.constant 0 : i32
    %c0_i32_0 = arith.constant 0 : i32
    %c0_i32_1 = arith.constant 0 : i32
    return %c0_i32, %c0_i32_0 : i32, i32
  }
  func.func @transform_5(%arg0: i32) -> (i32, i32) {
    %c0_i32 = arith.constant 0 : i32
    %c0_i32_0 = arith.constant 0 : i32
    return %arg0, %c0_i32 : i32, i32
  }
}

</mosaic_0001>

<llo_original>
// kernel: tpu_custom_call.1
$region0: #{tpu_custom_call.1}
  #allocation0 [shape = 'u32[]', space=smem, size = 0x4, offset = 0x4, fixed_abs, tag = 'smem constant byte address 0x4 - core index']
  #allocation1 [shape = 'u32[72,128]{1,0:T(1,128)}', space=vmem, size = 0x9000, scoped, tag = 'internal scratch']
  %s0 = inlined_call_operand.vmem [shape: f32[16,32], index: 0, kind: input, shape index: {}]
  %s1 = inlined_call_operand.vmem [shape: f32[32,64], index: 1, kind: input, shape index: {}]
  %s2 = inlined_call_operand.vmem [shape: f32[1,64], index: 2, kind: input, shape index: {}]
  %s3 = inlined_call_operand.vmem [shape: f32[64,32], index: 3, kind: input, shape index: {}]
  %s4 = inlined_call_operand.vmem [shape: f32[1,32], index: 4, kind: input, shape index: {}]
  %s5 = inlined_call_operand.hbm [shape: f32[16,32], index: 5, kind: output, shape index: {}]
  %s6 = sld [smem:[#allocation0]]
  $region30: #{tpu_custom_call.1} parent=0
    _
  %s8 = ssub.s32 1, %s6
  %s9 = scalar_select 0, %s8, %s6
  $region1: #{tpu_custom_call.1} parent=0
    #allocation2 [shape = 'u8[8192]{0}', space=vmem, size = 0x2000, scoped, tag = 'output window, operand 0, single buffered']
    #allocation3 [shape = 's32[1]{0}', space=sflag, size = 0x4, scoped, tag = 'scoped memory for tpu_custom_call.1']
    %10 = vsyncpa [#allocation3], 0
    // Predicated region
    $region2: #{tpu_custom_call.1} parent=1 // pred_check
      _
    $region3: #{tpu_custom_call.1} parent=1 // pred_check_branch
      %12 = sbr.rel (0) target = $region5
    $region4: #{tpu_custom_call.1} parent=1 // pred_region
      _
    $region5: #{tpu_custom_call.1} parent=1 // pred_fallthru
      _
    // Predicated region
    $region6: #{tpu_custom_call.1} parent=1 // pred_check
      _
    $region7: #{tpu_custom_call.1} parent=1 // pred_check_branch
      %14 = sbr.rel (0) target = $region9
    $region8: #{tpu_custom_call.1} parent=1 // pred_region
      _
    $region9: #{tpu_custom_call.1} parent=1 // pred_fallthru
      _
    // Predicated region
    $region10: #{tpu_custom_call.1} parent=1 // pred_check
      _
    $region11: #{tpu_custom_call.1} parent=1 // pred_check_branch
      %16 = sbr.rel (0) target = $region13
    $region12: #{tpu_custom_call.1} parent=1 // pred_region
      _
    $region13: #{tpu_custom_call.1} parent=1 // pred_fallthru
      _
    // Predicated region
    $region14: #{tpu_custom_call.1} parent=1 // pred_check
      _
    $region15: #{tpu_custom_call.1} parent=1 // pred_check_branch
      %18 = sbr.rel (0) target = $region17
    $region16: #{tpu_custom_call.1} parent=1 // pred_region
      _
    $region17: #{tpu_custom_call.1} parent=1 // pred_fallthru
      _
    // Predicated region
    $region18: #{tpu_custom_call.1} parent=1 // pred_check
      _
    $region19: #{tpu_custom_call.1} parent=1 // pred_check_branch
      %20 = sbr.rel (0) target = $region21
    $region20: #{tpu_custom_call.1} parent=1 // pred_region
      _
    $region21: #{tpu_custom_call.1} parent=1 // pred_fallthru
      _
    %v21 = vld [vmem:[%s0] sm:$0xff]
    %v22 = vld [vmem:[%s0 + $0x8] sm:$0xff]
    %v23 = vld [vmem:[%s1] sm:$0xff]
    %v24 = vld [vmem:[%s1 + $0x8] sm:$0xff]
    %v25 = vld [vmem:[%s1 + $0x10] sm:$0xff]
    %v26 = vld [vmem:[%s1 + $0x18] sm:$0xff]
    %v27 = vld [vmem:[%s2] sm:$0x1]
    %v29 = vperm.slane %v27, 0
    %vm31 = vcmask 261120
    %v33 = vsel %vm31, %v21, 0
    %v36 = vsel %vm31, %v22, 0
    %38 = vmatpush.msra.mxu0 0.0
    %39 = vmatpush.msra.mxu0 0.0
    %40 = vmatpush.msra.mxu0 0.0
    %41 = vmatpush.msra.mxu0 0.0
    %42 = vmatpush.msra.mxu0 0.0
    %43 = vmatpush.msra.mxu0 0.0
    %44 = vmatpush.msra.mxu0 0.0
    %45 = vmatpush.msra.mxu0 0.0
    %46 = vmatpush.msra.mxu0 0.0
    %47 = vmatpush.msra.mxu0 0.0
    %48 = vmatpush.msra.mxu0 0.0
    %49 = vmatpush.msra.mxu0 0.0
    %50 = vmatpush.msra.mxu0 %v26
    %51 = vmatpush.msra.mxu0 %v25
    %52 = vmatpush.msra.mxu0 %v24
    %53 = vmatpush.msra.mxu0 %v23
    %54 = vmatmul.f32.gmra.mxu0 %v33
    %v55 = vpop.f32.mrf.mxu0
    %v56 = vadd.f32 %v29, %v55
    %57 = vmatmul.f32.gmra.mxu0 %v36
    %v58 = vpop.f32.mrf.mxu0
    %v59 = vadd.f32 %v29, %v58
    %60 = vdwg.mxu0
    %v61 = vmax.f32 %v56, 0.0
    %v62 = vmax.f32 %v59, 0.0
    %v63 = vld [vmem:[%s3] sm:$0xff]
    %v64 = vld [vmem:[%s3 + $0x8] sm:$0xff]
    %v65 = vld [vmem:[%s3 + $0x10] sm:$0xff]
    %v66 = vld [vmem:[%s3 + $0x18] sm:$0xff]
    %v67 = vld [vmem:[%s3 + $0x20] sm:$0xff]
    %v68 = vld [vmem:[%s3 + $0x28] sm:$0xff]
    %v69 = vld [vmem:[%s3 + $0x30] sm:$0xff]
    %v70 = vld [vmem:[%s3 + $0x38] sm:$0xff]
    %v71 = vld [vmem:[%s4] sm:$0x1]
    %v73 = vperm.slane %v71, 0
    %vm75 = vcmask 523264
    %v77 = vsel %vm75, %v61, 0
    %v80 = vsel %vm75, %v62, 0
    %82 = vmatpush.msra.mxu0 0.0
    %83 = vmatpush.msra.mxu0 0.0
    %84 = vmatpush.msra.mxu0 0.0
    %85 = vmatpush.msra.mxu0 0.0
    %86 = vmatpush.msra.mxu0 0.0
    %87 = vmatpush.msra.mxu0 0.0
    %88 = vmatpush.msra.mxu0 0.0
    %89 = vmatpush.msra.mxu0 0.0
    %90 = vmatpush.msra.mxu0 %v70
    %91 = vmatpush.msra.mxu0 %v69
    %92 = vmatpush.msra.mxu0 %v68
    %93 = vmatpush.msra.mxu0 %v67
    %94 = vmatpush.msra.mxu0 %v66
    %95 = vmatpush.msra.mxu0 %v65
    %96 = vmatpush.msra.mxu0 %v64
    %97 = vmatpush.msra.mxu0 %v63
    %98 = vmatmul.f32.gmra.mxu0 %v77
    %v99 = vpop.f32.mrf.mxu0
    %v100 = vadd.f32 %v73, %v99
    %101 = vmatmul.f32.gmra.mxu0 %v80
    %v102 = vpop.f32.mrf.mxu0
    %v103 = vadd.f32 %v73, %v102
    %104 = vdwg.mxu0
    %105 = vst.msk [vmem:[#allocation2] sm:$0xff] %vm31, %v100
    %106 = vst.msk [vmem:[#allocation2 + $0x8] sm:$0xff] %vm31, %v103
    // Predicated region
    $region22: #{tpu_custom_call.1} parent=1 // pred_check
      _
    $region23: #{tpu_custom_call.1} parent=1 // pred_check_branch
      %108 = sbr.rel (0) target = $region25
    $region24: #{tpu_custom_call.1} parent=1 // pred_region
      %110 = vsyncadd [#allocation3], 0
      %s111 = sshll.u32 [#allocation2], 4
      %s112 = int_to_ptr.vmem [resolvable:$true] %s111
      %s113 = sshll.u32 %s5, 4
      %s114 = int_to_ptr.hbm [resolvable:$true] %s113
      %119 = dma.vmem_to_hbm [thread:$0]  %s112, 256, %s114, [#allocation3], 128, 128, 8
    $region25: #{tpu_custom_call.1} parent=1 // pred_fallthru
      _
    // Predicated region
    $region26: #{tpu_custom_call.1} parent=1 // pred_check
      _
    $region27: #{tpu_custom_call.1} parent=1 // pred_check_branch
      %121 = sbr.rel (0) target = $region29
    $region28: #{tpu_custom_call.1} parent=1 // pred_region
      %123 = dma.done [#allocation3], 256
    $region29: #{tpu_custom_call.1} parent=1 // pred_fallthru
      _
    %124 = vsyncpa [#allocation3], 1

</llo_original>
